<compile_context>
chip_gen: v7x
topology: tpu7x:2x2x1
jax: 0.10.0
libtpu: 0.0.40
codegen_flags: <defaults>
</compile_context>

<pallas_src>
import functools

import jax
import jax.numpy as jnp
from jax import lax
from jax.experimental import pallas as pl
from jax.experimental.pallas import tpu as pltpu

_EPS = 1e-5
_MIB = 1024 * 1024


def _vmem_capacity_bytes():
    try:
        return int(pltpu.get_tpu_info().vmem_capacity_bytes)
    except Exception:  # pragma: no cover - conservative fallback (v7x size)
        return 64 * _MIB


# ---------------------------------------------------------------------------
# Fast path: whole activation resident in VMEM -> single fused kernel.
# ---------------------------------------------------------------------------
def _fused_kernel(x_ref, gamma_ref, beta_ref, o_ref, *, inv_count, eps):
    n, c, _ = x_ref.shape
    zero = jnp.zeros((c, 1), jnp.float32)

    def sum_body(b, acc):
        xb = x_ref[b].astype(jnp.float32)                      # (C, P)
        return acc + jnp.sum(xb, axis=1, keepdims=True)

    mean = lax.fori_loop(0, n, sum_body, zero) * inv_count     # (C, 1)

    def var_body(b, acc):
        d = x_ref[b].astype(jnp.float32) - mean
        return acc + jnp.sum(d * d, axis=1, keepdims=True)

    # Exact centered (biased) variance -- no E[x^2]-mean^2 cancellation.
    var = lax.fori_loop(0, n, var_body, zero) * inv_count      # (C, 1)

    scale = gamma_ref[...] * lax.rsqrt(var + eps)              # (C, 1)
    shift = beta_ref[...] - mean * scale

    @pl.loop(0, n)
    def _(b):
        xb = x_ref[b].astype(jnp.float32)
        o_ref[b] = jnp.maximum(xb * scale + shift, 0.0).astype(o_ref.dtype)


# ---------------------------------------------------------------------------
# Tiled path, pass 1: per-slice shifted partial sums / sums of squares.
# ---------------------------------------------------------------------------
def _stats_kernel(x_ref, psum_ref, psq_ref, pilot_ref, *, spatial, lane_mask):
    bn, c, tp = x_ref.shape
    acc_w = psum_ref.shape[2]
    ng = tp // acc_w
    j = pl.program_id(1)

    @pl.when(j == 0)
    def _():
        # Per-slice pilot: mean of the first lane group of batch-row 0.
        x0 = x_ref[0].astype(jnp.float32)[:, :acc_w]            # (C, A)
        pilot_ref[...] = jnp.mean(x0, axis=1, keepdims=True)[None]
        psum_ref[...] = jnp.zeros_like(psum_ref)
        psq_ref[...] = jnp.zeros_like(psq_ref)

    pilot = pilot_ref[0]                                        # (C, 1)
    if lane_mask:
        iota = lax.broadcasted_iota(jnp.int32, (c, acc_w), 1)   # hoisted
    base = j * tp

    acc_s = jnp.zeros((c, acc_w), jnp.float32)
    acc_q = jnp.zeros((c, acc_w), jnp.float32)
    for b in range(bn):
        xb = x_ref[b].astype(jnp.float32)                       # (C, tp)
        for g in range(ng):
            d = xb[:, g * acc_w:(g + 1) * acc_w] - pilot        # (C, A)
            if lane_mask:
                d = jnp.where(base + g * acc_w + iota < spatial, d, 0.0)
            acc_s = acc_s + d
            acc_q = acc_q + d * d
    psum_ref[...] += acc_s[None]
    psq_ref[...] += acc_q[None]


# ---------------------------------------------------------------------------
# Tiled path, pass 2: y = max(x * scale + shift, 0) on a (R, tp) tile.
# ---------------------------------------------------------------------------
def _norm_kernel(x_ref, scale_ref, shift_ref, o_ref):
    x = x_ref[...].astype(jnp.float32)
    y = x * scale_ref[...] + shift_ref[...]
    o_ref[...] = jnp.maximum(y, 0.0).astype(o_ref.dtype)


# ---------------------------------------------------------------------------
# Tile-size selection helpers.
# ---------------------------------------------------------------------------
def _pick_lane_tile(P, row_bytes, target_bytes, max_lanes=None):
    """Lane tile: multiple of 128 (or P when P < 128); prefers divisors of P."""
    if P < 128:
        return P
    cap = min(128 * (P // 128), (target_bytes // max(1, row_bytes)) // 128 * 128)
    if max_lanes is not None:
        cap = min(cap, max_lanes)
    cap = max(128, cap)
    best = 0
    t = 128
    while t <= cap:
        if P % t == 0:
            best = t
        t += 128
    return best if best else cap


def _pick_acc_width(tp):
    """Accumulator lane width: largest divisor of tp among 128..1024."""
    if tp <= 1024:
        return tp
    best = 128
    t = 256
    while t <= 1024:
        if tp % t == 0:
            best = t
        t += 128
    return best


def _pick_batch_rows(N, block_row_bytes, ng, target_bytes):
    """Leading block rows: grow the block when C * tp is small."""
    for cand in (32, 16, 8, 4, 2):
        if N % cand:
            continue
        if cand * block_row_bytes > target_bytes:
            continue
        if cand * ng > 64:          # bound traced-op count per grid step
            continue
        return cand
    return 1


def _pick_row_tile(NC, lane_bytes, target_bytes):
    if NC < 8:
        return NC
    return max(8, min((NC // 8) * 8,
                      (target_bytes // max(1, lane_bytes)) // 8 * 8))


# ---------------------------------------------------------------------------
# Wrapper.
# ---------------------------------------------------------------------------
def batch_norm_relu(x_nchw, gamma, beta, eps=_EPS, use_fast_path=None):
    """x_nchw: (N, C, H, W). gamma, beta: (C,). Returns (N, C, H, W)."""
    N, C, H, W = x_nchw.shape
    P = H * W
    itemsize = jnp.dtype(x_nchw.dtype).itemsize
    total_bytes = N * C * P * itemsize

    vmem_cap = _vmem_capacity_bytes()
    target_bytes = 2 * _MIB if vmem_cap <= 64 * _MIB else 4 * _MIB
    tiled_vmem = 32 * _MIB if vmem_cap <= 64 * _MIB else 64 * _MIB
    fast_limit = vmem_cap // 6
    fast_vmem = min((vmem_cap * 3) // 4, 96 * _MIB)

    x3 = x_nchw.reshape(N, C, P)                 # free reshape, native layout
    gamma_f = gamma.astype(jnp.float32).reshape(C)
    beta_f = beta.astype(jnp.float32).reshape(C)

    if use_fast_path is None:
        use_fast_path = total_bytes <= fast_limit

    # ------------------------- fast path (fused) --------------------------
    if use_fast_path:
        out3 = pl.pallas_call(
            functools.partial(_fused_kernel,
                              inv_count=1.0 / float(N * P), eps=float(eps)),
            out_shape=jax.ShapeDtypeStruct((N, C, P), x_nchw.dtype),
            grid=(1,),
            in_specs=[pl.BlockSpec((N, C, P), lambda i: (0, 0, 0)),
                      pl.BlockSpec((C, 1), lambda i: (0, 0)),
                      pl.BlockSpec((C, 1), lambda i: (0, 0))],
            out_specs=pl.BlockSpec((N, C, P), lambda i: (0, 0, 0)),
            compiler_params=pltpu.CompilerParams(
                dimension_semantics=("arbitrary",),
                vmem_limit_bytes=fast_vmem),
            cost_estimate=pl.CostEstimate(
                flops=6 * N * C * P, transcendentals=C,
                bytes_accessed=2 * N * C * P * itemsize),
        )(x3, gamma_f.reshape(C, 1), beta_f.reshape(C, 1))
        return out3.reshape(N, C, H, W)

    # --------------------- pass 1: per-slice statistics --------------------
    tp = _pick_lane_tile(P, C * itemsize, target_bytes, max_lanes=8192)
    acc_w = P if P < 128 else _pick_acc_width(tp)
    ng = tp // acc_w
    bn = _pick_batch_rows(N, C * tp * itemsize, ng, target_bytes)
    ns = N // bn
    n_p = pl.cdiv(P, tp)
    lane_mask = (P % tp) != 0

    psum, psq, pilot = pl.pallas_call(
        functools.partial(_stats_kernel, spatial=P, lane_mask=lane_mask),
        out_shape=(jax.ShapeDtypeStruct((ns, C, acc_w), jnp.float32),
                   jax.ShapeDtypeStruct((ns, C, acc_w), jnp.float32),
                   jax.ShapeDtypeStruct((ns, C, 1), jnp.float32)),
        grid=(ns, n_p),
        in_specs=[pl.BlockSpec((bn, C, tp), lambda i, j: (i, 0, j))],
        out_specs=(pl.BlockSpec((1, C, acc_w), lambda i, j: (i, 0, 0)),
                   pl.BlockSpec((1, C, acc_w), lambda i, j: (i, 0, 0)),
                   pl.BlockSpec((1, C, 1), lambda i, j: (i, 0, 0))),
        compiler_params=pltpu.CompilerParams(
            dimension_semantics=("parallel", "arbitrary"),
            vmem_limit_bytes=tiled_vmem),
        cost_estimate=pl.CostEstimate(
            flops=4 * N * C * P, transcendentals=0,
            bytes_accessed=N * C * P * itemsize + ns * C * (2 * acc_w + 1) * 4),
    )(x3)

    # ---- fold: exact mean / biased variance from shifted partial sums ----
    cnt = float(bn * P)                  # elements per slice per channel
    n_tot = float(N * P)
    s = jnp.sum(psum, axis=2)            # (ns, C)   sum(x - pilot)
    q = jnp.sum(psq, axis=2)             # (ns, C)   sum((x - pilot)^2)
    p0 = pilot[:, :, 0]                  # (ns, C)
    mean = jnp.sum(s + cnt * p0, axis=0) / n_tot                      # (C,)
    d = p0 - mean[None, :]
    var = jnp.maximum(
        jnp.sum(q + 2.0 * d * s + cnt * d * d, axis=0) / n_tot, 0.0)  # (C,)
    scale_c = gamma_f * lax.rsqrt(var + float(eps))
    shift_c = beta_f - mean * scale_c

    # ------------- pass 2: normalize + ReLU on the flat view ---------------
    nc = N * C
    x2 = x3.reshape(nc, P)
    scale2 = jnp.broadcast_to(scale_c[None, :], (N, C)).reshape(nc, 1)
    shift2 = jnp.broadcast_to(shift_c[None, :], (N, C)).reshape(nc, 1)

    tp2 = _pick_lane_tile(P, 8 * itemsize, target_bytes)
    rt = _pick_row_tile(nc, tp2 * itemsize, target_bytes)

    out2 = pl.pallas_call(
        _norm_kernel,
        out_shape=jax.ShapeDtypeStruct((nc, P), x_nchw.dtype),
        grid=(pl.cdiv(nc, rt), pl.cdiv(P, tp2)),
        in_specs=[pl.BlockSpec((rt, tp2), lambda i, j: (i, j)),
                  pl.BlockSpec((rt, 1), lambda i, j: (i, 0)),
                  pl.BlockSpec((rt, 1), lambda i, j: (i, 0))],
        out_specs=pl.BlockSpec((rt, tp2), lambda i, j: (i, j)),
        compiler_params=pltpu.CompilerParams(
            dimension_semantics=("parallel", "parallel"),
            vmem_limit_bytes=tiled_vmem),
        cost_estimate=pl.CostEstimate(
            flops=3 * N * C * P, transcendentals=0,
            bytes_accessed=2 * N * C * P * itemsize + 2 * nc * 4),
    )(x2, scale2, shift2)

    return out2.reshape(N, C, H, W)


def _reference(x_nchw, gamma, beta):
    """Pure-JAX training-mode BatchNorm2d + ReLU (biased variance, eps=1e-5)."""
    x = x_nchw.astype(jnp.float32)
    mean = jnp.mean(x, axis=(0, 2, 3), keepdims=True)
    var = jnp.mean((x - mean) ** 2, axis=(0, 2, 3), keepdims=True)
    y = gamma.reshape(1, -1, 1, 1) * (x - mean) * lax.rsqrt(var + _EPS) \
        + beta.reshape(1, -1, 1, 1)
    return jnp.maximum(y, 0.0).astype(x_nchw.dtype)


if __name__ == "__main__":
    key = jax.random.PRNGKey(0)
    k1, k2, k3, k4 = jax.random.split(key, 4)

    # Test 1: module-default parameters (gamma=1, beta=0) at the spec shape.
    # Small activation -> fused single-kernel VMEM-resident fast path.
    N, C, H, W = 2, 4, 16, 16
    x = jax.random.normal(k1, (N, C, H, W), dtype=jnp.float32)
    gamma = jnp.ones((C,), dtype=jnp.float32)     # BatchNorm2d default init
    beta = jnp.zeros((C,), dtype=jnp.float32)
    out = jax.block_until_ready(batch_norm_relu(x, gamma, beta))
    ref = _reference(x, gamma, beta)
    assert out.shape == (N, C, H, W)
    assert jnp.allclose(out, ref, atol=1e-4, rtol=1e-4)

    # Test 2: force the tiled two-pass path (megacore-parallel stats with
    # shifted partial sums, lane masking for P % 128 != 0, flat normalize
    # pass) on a spatial extent that is not a multiple of 128.
    N2, C2, H2, W2 = 2, 4, 24, 24
    x2 = jax.random.normal(k2, (N2, C2, H2, W2), dtype=jnp.float32) * 1.5 + 0.75
    gamma2 = 1.0 + 0.2 * jax.random.normal(k3, (C2,), dtype=jnp.float32)
    beta2 = 0.1 * jax.random.normal(k4, (C2,), dtype=jnp.float32)
    out2 = jax.block_until_ready(
        batch_norm_relu(x2, gamma2, beta2, use_fast_path=False))
    ref2 = _reference(x2, gamma2, beta2)
    assert out2.shape == (N2, C2, H2, W2)
    assert jnp.allclose(out2, ref2, atol=1e-4, rtol=1e-4)

    print("KERNEL_OK")
</pallas_src>

<mosaic_0001>
module attributes {stable_mosaic.version = 11 : i64} {
  func.func @_fused_kernel(%arg0: i32, %arg1: memref<2x4x256xf32, #tpu.memory_space<vmem>>, %arg2: memref<4x1xf32, #tpu.memory_space<vmem>>, %arg3: memref<4x1xf32, #tpu.memory_space<vmem>>, %arg4: memref<2x4x256xf32, #tpu.memory_space<vmem>>) attributes {dimension_semantics = [#tpu.dimension_semantics<arbitrary>], iteration_bounds = array<i64: 1>, scalar_prefetch = 0 : i64, scratch_operands = 0 : i64, tpu.core_type = #tpu.core_type<tc>, window_params = [{pipeline_mode = #tpu.pipeline_mode<synchronous>, transform_indices = @transform_0, window_bounds = array<i64: 2, 4, 256>}, {pipeline_mode = #tpu.pipeline_mode<synchronous>, transform_indices = @transform_1, window_bounds = array<i64: 4, 1>}, {pipeline_mode = #tpu.pipeline_mode<synchronous>, transform_indices = @transform_2, window_bounds = array<i64: 4, 1>}, {pipeline_mode = #tpu.pipeline_mode<synchronous>, transform_indices = @transform_3, window_bounds = array<i64: 2, 4, 256>}]} {
    %cst = arith.constant 0.000000e+00 : f32
    %0 = vector.broadcast %cst : f32 to vector<4x1xf32>
    %c0_i32 = arith.constant 0 : i32
    %c2_i32 = arith.constant 2 : i32
    %1 = arith.addi %c0_i32, %c2_i32 : i32
    %c1_i32 = arith.constant 1 : i32
    %2 = scf.for %arg5 = %c0_i32 to %1 step %c1_i32 iter_args(%arg6 = %0) -> (vector<4x1xf32>)  : i32 {
      %18 = arith.index_cast %arg5 : i32 to index
      %c0_15 = arith.constant 0 : index
      %c0_16 = arith.constant 0 : index
      %19 = vector.load %arg1[%18, %c0_15, %c0_16] : memref<2x4x256xf32, #tpu.memory_space<vmem>>, vector<1x4x256xf32>
      %20 = vector.shape_cast %19 : vector<1x4x256xf32> to vector<4x256xf32>
      %cst_17 = arith.constant dense<0.000000e+00> : vector<4xf32>
      %21 = vector.multi_reduction <add>, %20, %cst_17 [1] : vector<4x256xf32> to vector<4xf32>
      %22 = vector.shape_cast %21 : vector<4xf32> to vector<4x1xf32>
      %23 = arith.addf %arg6, %22 : vector<4x1xf32>
      scf.yield %23 : vector<4x1xf32>
    }
    %c2_i32_0 = arith.constant 2 : i32
    %cst_1 = arith.constant 0.001953125 : f32
    %3 = vector.broadcast %cst_1 : f32 to vector<4x1xf32>
    %4 = arith.mulf %2, %3 : vector<4x1xf32>
    %c0_i32_2 = arith.constant 0 : i32
    %c2_i32_3 = arith.constant 2 : i32
    %5 = arith.addi %c0_i32_2, %c2_i32_3 : i32
    %c1_i32_4 = arith.constant 1 : i32
    %6 = scf.for %arg5 = %c0_i32_2 to %5 step %c1_i32_4 iter_args(%arg6 = %0) -> (vector<4x1xf32>)  : i32 {
      %18 = arith.index_cast %arg5 : i32 to index
      %c0_15 = arith.constant 0 : index
      %c0_16 = arith.constant 0 : index
      %19 = vector.load %arg1[%18, %c0_15, %c0_16] : memref<2x4x256xf32, #tpu.memory_space<vmem>>, vector<1x4x256xf32>
      %20 = vector.shape_cast %19 : vector<1x4x256xf32> to vector<4x256xf32>
      %21 = vector.broadcast %4 : vector<4x1xf32> to vector<4x256xf32>
      %22 = arith.subf %20, %21 : vector<4x256xf32>
      %23 = arith.mulf %22, %22 : vector<4x256xf32>
      %cst_17 = arith.constant dense<0.000000e+00> : vector<4xf32>
      %24 = vector.multi_reduction <add>, %23, %cst_17 [1] : vector<4x256xf32> to vector<4xf32>
      %25 = vector.shape_cast %24 : vector<4xf32> to vector<4x1xf32>
      %26 = arith.addf %arg6, %25 : vector<4x1xf32>
      scf.yield %26 : vector<4x1xf32>
    }
    %c2_i32_5 = arith.constant 2 : i32
    %cst_6 = arith.constant 0.001953125 : f32
    %7 = vector.broadcast %cst_6 : f32 to vector<4x1xf32>
    %8 = arith.mulf %6, %7 : vector<4x1xf32>
    %c0 = arith.constant 0 : index
    %c0_7 = arith.constant 0 : index
    %9 = vector.load %arg2[%c0, %c0_7] : memref<4x1xf32, #tpu.memory_space<vmem>>, vector<4x1xf32>
    %cst_8 = arith.constant 9.99999974E-6 : f32
    %10 = vector.broadcast %cst_8 : f32 to vector<4x1xf32>
    %11 = arith.addf %8, %10 : vector<4x1xf32>
    %12 = math.rsqrt %11 : vector<4x1xf32>
    %13 = arith.mulf %9, %12 : vector<4x1xf32>
    %c0_9 = arith.constant 0 : index
    %c0_10 = arith.constant 0 : index
    %14 = vector.load %arg3[%c0_9, %c0_10] : memref<4x1xf32, #tpu.memory_space<vmem>>, vector<4x1xf32>
    %15 = arith.mulf %4, %13 : vector<4x1xf32>
    %16 = arith.subf %14, %15 : vector<4x1xf32>
    %c0_i32_11 = arith.constant 0 : i32
    %c2_i32_12 = arith.constant 2 : i32
    %17 = arith.addi %c0_i32_11, %c2_i32_12 : i32
    %c1_i32_13 = arith.constant 1 : i32
    scf.for %arg5 = %c0_i32_11 to %17 step %c1_i32_13  : i32 {
      %c1_i32_15 = arith.constant 1 : i32
      %18 = arith.muli %arg5, %c1_i32_15 : i32
      %c0_i32_16 = arith.constant 0 : i32
      %19 = arith.addi %c0_i32_16, %18 : i32
      %20 = arith.index_cast %19 : i32 to index
      %c0_17 = arith.constant 0 : index
      %c0_18 = arith.constant 0 : index
      %21 = vector.load %arg1[%20, %c0_17, %c0_18] : memref<2x4x256xf32, #tpu.memory_space<vmem>>, vector<1x4x256xf32>
      %22 = vector.shape_cast %21 : vector<1x4x256xf32> to vector<4x256xf32>
      %23 = vector.broadcast %13 : vector<4x1xf32> to vector<4x256xf32>
      %24 = arith.mulf %22, %23 : vector<4x256xf32>
      %25 = vector.broadcast %16 : vector<4x1xf32> to vector<4x256xf32>
      %26 = arith.addf %24, %25 : vector<4x256xf32>
      %cst_19 = arith.constant 0.000000e+00 : f32
      %27 = vector.broadcast %cst_19 : f32 to vector<4x256xf32>
      %28 = arith.maximumf %26, %27 : vector<4x256xf32>
      %29 = arith.index_cast %19 : i32 to index
      %c0_20 = arith.constant 0 : index
      %c0_21 = arith.constant 0 : index
      %30 = vector.load %arg4[%29, %c0_20, %c0_21] : memref<2x4x256xf32, #tpu.memory_space<vmem>>, vector<1x4x256xf32>
      %31 = vector.shape_cast %30 : vector<1x4x256xf32> to vector<4x256xf32>
      %32 = vector.shape_cast %28 : vector<4x256xf32> to vector<1x4x256xf32>
      tpu.vector_store %arg4[%29, %c0_20, %c0_21], %32 {strides = array<i32>} : memref<2x4x256xf32, #tpu.memory_space<vmem>>, vector<1x4x256xf32>,
    }
    %c2_i32_14 = arith.constant 2 : i32
    return
  }
  func.func @transform_0(%arg0: i32) -> (i32, i32, i32) {
    %c0_i32 = arith.constant 0 : i32
    %c0_i32_0 = arith.constant 0 : i32
    %c0_i32_1 = arith.constant 0 : i32
    %c0_i32_2 = arith.constant 0 : i32
    return %c0_i32, %c0_i32_0, %c0_i32_1 : i32, i32, i32
  }
  func.func @transform_1(%arg0: i32) -> (i32, i32) {
    %c0_i32 = arith.constant 0 : i32
    %c0_i32_0 = arith.constant 0 : i32
    %c0_i32_1 = arith.constant 0 : i32
    return %c0_i32, %c0_i32_0 : i32, i32
  }
  func.func @transform_2(%arg0: i32) -> (i32, i32) {
    %c0_i32 = arith.constant 0 : i32
    %c0_i32_0 = arith.constant 0 : i32
    %c0_i32_1 = arith.constant 0 : i32
    return %c0_i32, %c0_i32_0 : i32, i32
  }
  func.func @transform_3(%arg0: i32) -> (i32, i32, i32) {
    %c0_i32 = arith.constant 0 : i32
    %c0_i32_0 = arith.constant 0 : i32
    %c0_i32_1 = arith.constant 0 : i32
    %c0_i32_2 = arith.constant 0 : i32
    return %c0_i32, %c0_i32_0, %c0_i32_1 : i32, i32, i32
  }
}

</mosaic_0001>

<llo_original>
// kernel: tpu_custom_call.1
$region0: #{tpu_custom_call.1}
  #allocation0 [shape = 'u32[]', space=smem, size = 0x4, offset = 0x4, fixed_abs, tag = 'smem constant byte address 0x4 - core index']
  #allocation1 [shape = 'u32[144,128]{1,0:T(1,128)}', space=vmem, size = 0x12000, scoped, tag = 'internal scratch']
  %s0 = inlined_call_operand.hbm [shape: f32[2,4,256], index: 0, kind: input, shape index: {}]
  %s1 = inlined_call_operand.vmem [shape: f32[4,1], index: 1, kind: input, shape index: {}]
  %s2 = inlined_call_operand.vmem [shape: f32[4,1], index: 2, kind: input, shape index: {}]
  %s3 = inlined_call_operand.hbm [shape: f32[2,4,256], index: 3, kind: output, shape index: {}]
  %s4 = sld [smem:[#allocation0]]
  $region47: #{tpu_custom_call.1} parent=0
    _
  %s6 = ssub.s32 1, %s4
  %s7 = scalar_select 0, %s6, %s4
  $region1: #{tpu_custom_call.1} parent=0
    #allocation2 [shape = 'u8[8192]{0}', space=vmem, size = 0x2000, scoped, tag = 'input window, operand 0, single buffered']
    #allocation3 [shape = 's32[1]{0}', space=sflag, size = 0x4, scoped, tag = 'scoped memory for tpu_custom_call.1']
    #allocation4 [shape = 's32[1]{0}', space=sflag, size = 0x4, scoped, tag = 'scoped memory for tpu_custom_call.1']
    #allocation5 [shape = 'u8[8192]{0}', space=vmem, size = 0x2000, scoped, tag = 'output window, operand 0, single buffered']
    %8 = vsyncpa [#allocation3], 0
    %9 = vsyncpa [#allocation4], 0
    // Predicated region
    $region2: #{tpu_custom_call.1} parent=1 // pred_check
      _
    $region3: #{tpu_custom_call.1} parent=1 // pred_check_branch
      %11 = sbr.rel (0) target = $region5
    $region4: #{tpu_custom_call.1} parent=1 // pred_region
      %s13 = ssub.s32 256, 256
      %14 = vsyncadd [#allocation3], %s13
      %s15 = sshll.u32 [#allocation2], 4
      %s16 = int_to_ptr.vmem [resolvable:$true] %s15
      %21 = dma.hbm_to_vmem [thread:$0]  %s0, 256, %s16, [#allocation3], 128, 128, 8
    $region5: #{tpu_custom_call.1} parent=1 // pred_fallthru
      _
    // Predicated region
    $region6: #{tpu_custom_call.1} parent=1 // pred_check
      _
    $region7: #{tpu_custom_call.1} parent=1 // pred_check_branch
      %23 = sbr.rel (0) target = $region9
    $region8: #{tpu_custom_call.1} parent=1 // pred_region
      _
    $region9: #{tpu_custom_call.1} parent=1 // pred_fallthru
      _
    // Predicated region
    $region10: #{tpu_custom_call.1} parent=1 // pred_check
      _
    $region11: #{tpu_custom_call.1} parent=1 // pred_check_branch
      %25 = sbr.rel (0) target = $region13
    $region12: #{tpu_custom_call.1} parent=1 // pred_region
      _
    $region13: #{tpu_custom_call.1} parent=1 // pred_fallthru
      _
    // Predicated region
    $region14: #{tpu_custom_call.1} parent=1 // pred_check
      _
    $region15: #{tpu_custom_call.1} parent=1 // pred_check_branch
      %27 = sbr.rel (0) target = $region17
    $region16: #{tpu_custom_call.1} parent=1 // pred_region
      %28 = dma.done [#allocation3], 256
    $region17: #{tpu_custom_call.1} parent=1 // pred_fallthru
      _
    loop: start=0, step=1, limit=2
    $region18: #{tpu_custom_call.1} parent=1 // loop_pre_header
      _
    $region19: #{tpu_custom_call.1} parent=1 // loop_header
      %s30 = sphi 0, %s34
      %p31 = scmp.ge.s32.totalorder %s30, 2
      %v35 = vphi 0.0, %v49
    $region20: #{tpu_custom_call.1} parent=1 // loop_header_branch
      %33 = sbr.rel (%p31) target = $region24
    $region21: #{tpu_custom_call.1} parent=1 // loop_body
      %s36 = smul.u32 %s30, 2
      %s37 = smul.addr %s36, 4
      %s38 = scalar_lea.vmem [#allocation2], %s37
      %v39 = vld [vmem:[%s38] sm:$0xff]
      %v41 = vcombine.high %v39, %v39
      %vm43 = vcmask 1043456
      %v44 = vsel %vm43, %v39, 0.0
      %v45 = vsel %vm43, %v41, 0.0
      %v46 = vadd.f32 %v44, %v45
      %47 = vadd.xlane.f32.xlu0 %v46
      %v48 = vpop.xlane.xlu0 %47
      %v49 = vadd.f32 %v35, %v48
    $region22: #{tpu_custom_call.1} parent=1 // loop_footer
      %s34 = sadd.s32 1, %s30
    $region23: #{tpu_custom_call.1} parent=1 // loop_footer_branch
      %29 = sbr.rel target = $region19
    $region24: #{tpu_custom_call.1} parent=1 // loop_exit
      _
    %v50 = vmul.f32 %v35, 0.001953125
    loop: start=0, step=1, limit=2
    $region25: #{tpu_custom_call.1} parent=1 // loop_pre_header
      _
    $region26: #{tpu_custom_call.1} parent=1 // loop_header
      %s52 = sphi 0, %s56
      %p53 = scmp.ge.s32.totalorder %s52, 2
      %v57 = vphi 0.0, %v82
    $region27: #{tpu_custom_call.1} parent=1 // loop_header_branch
      %55 = sbr.rel (%p53) target = $region31
    $region28: #{tpu_custom_call.1} parent=1 // loop_body
      %s58 = smul.u32 %s52, 2
      %s59 = smul.addr %s58, 4
      %s60 = scalar_lea.vmem [#allocation2], %s59
      %v61 = vld [vmem:[%s60] sm:$0xff]
      %v64 = vunpack.c.l.s4 839922192
      %v65 = vunpack.c.0.s8 %v64
      %v66 = vlaneseq
      %v67 = vshrl.u32 %v66, 7
      %v68 = vsub.s32 %v65, %v67
      %v69 = vrot.slane %v50, %v68
      %v71 = vsub.f32 %v61, %v69
      %v72 = vmul.f32 %v71, %v71
      %v74 = vcombine.high %v72, %v72
      %vm76 = vcmask 1043456
      %v77 = vsel %vm76, %v72, 0.0
      %v78 = vsel %vm76, %v74, 0.0
      %v79 = vadd.f32 %v77, %v78
      %80 = vadd.xlane.f32.xlu0 %v79
      %v81 = vpop.xlane.xlu0 %80
      %v82 = vadd.f32 %v57, %v81
    $region29: #{tpu_custom_call.1} parent=1 // loop_footer
      %s56 = sadd.s32 1, %s52
    $region30: #{tpu_custom_call.1} parent=1 // loop_footer_branch
      %51 = sbr.rel target = $region26
    $region31: #{tpu_custom_call.1} parent=1 // loop_exit
      _
    %v83 = vmul.f32 %v57, 0.001953125
    %v84 = vld [vmem:[%s1] sm:$0xf]
    %v85 = vadd.f32 %v83, 1e-05
    %v86 = vrsqrt.pop %v85
    %v87 = vmul.f32 %v84, %v86
    %v88 = vld [vmem:[%s2] sm:$0xf]
    %v89 = vmul.f32 %v50, %v87
    %v90 = vsub.f32 %v88, %v89
    loop: start=0, step=1, limit=2
    $region32: #{tpu_custom_call.1} parent=1 // loop_pre_header
      _
    $region33: #{tpu_custom_call.1} parent=1 // loop_header
      %s92 = sphi 0, %s96
      %p93 = scmp.ge.s32.totalorder %s92, 2
    $region34: #{tpu_custom_call.1} parent=1 // loop_header_branch
      %95 = sbr.rel (%p93) target = $region38
    $region35: #{tpu_custom_call.1} parent=1 // loop_body
      %s97 = smul.u32 %s92, 2
      %s98 = smul.addr %s97, 4
      %s99 = scalar_lea.vmem [#allocation2], %s98
      %v100 = vld [vmem:[%s99] sm:$0xff]
      %102 = vset.pattern.permute.xlu0 0
      %103 = vperm.xlu0 %102, %v87
      %v104 = vpop.permute.xlu0 %103
      %v106 = vunpack.c.l.s4 839922192
      %v107 = vunpack.c.0.s8 %v106
      %v108 = vlaneseq
      %v109 = vshrl.u32 %v108, 7
      %v110 = vsub.s32 %v107, %v109
      %v111 = vrot.slane %v104, %v110
      %v113 = vmul.f32 %v100, %v111
      %115 = vset.pattern.permute.xlu0 0
      %116 = vperm.xlu0 %115, %v90
      %v117 = vpop.permute.xlu0 %116
      %v119 = vunpack.c.l.s4 839922192
      %v120 = vunpack.c.0.s8 %v119
      %v121 = vlaneseq
      %v122 = vshrl.u32 %v121, 7
      %v123 = vsub.s32 %v120, %v122
      %v124 = vrot.slane %v117, %v123
      %v126 = vadd.f32 %v113, %v124
      %v127 = vmax.f32 %v126, 0.0
      %s128 = smul.addr %s97, 4
      %s129 = scalar_lea.vmem [#allocation5], %s128
      %130 = vst [vmem:[%s129] sm:$0xff] %v127
    $region36: #{tpu_custom_call.1} parent=1 // loop_footer
      %s96 = sadd.s32 1, %s92
    $region37: #{tpu_custom_call.1} parent=1 // loop_footer_branch
      %91 = sbr.rel target = $region33
    $region38: #{tpu_custom_call.1} parent=1 // loop_exit
      _
    // Predicated region
    $region39: #{tpu_custom_call.1} parent=1 // pred_check
      _
    $region40: #{tpu_custom_call.1} parent=1 // pred_check_branch
      %132 = sbr.rel (0) target = $region42
    $region41: #{tpu_custom_call.1} parent=1 // pred_region
      %s134 = ssub.s32 256, 256
      %135 = vsyncadd [#allocation4], %s134
      %s136 = sshll.u32 [#allocation5], 4
      %s137 = int_to_ptr.vmem [resolvable:$true] %s136
      %142 = dma.vmem_to_hbm [thread:$0]  %s137, 256, %s3, [#allocation4], 128, 128, 8
    $region42: #{tpu_custom_call.1} parent=1 // pred_fallthru
      _
    // Predicated region
    $region43: #{tpu_custom_call.1} parent=1 // pred_check
      _
    $region44: #{tpu_custom_call.1} parent=1 // pred_check_branch
      %144 = sbr.rel (0) target = $region46
    $region45: #{tpu_custom_call.1} parent=1 // pred_region
      %145 = dma.done [#allocation4], 256
    $region46: #{tpu_custom_call.1} parent=1 // pred_fallthru
      _
    %146 = vsyncpa [#allocation3], 1
    %147 = vsyncpa [#allocation4], 1

</llo_original>
